<compile_context>
chip_gen: v7x
topology: tpu7x:2x2x1
jax: 0.10.0
libtpu: 0.0.40
codegen_flags: <defaults>
</compile_context>

<pallas_src>
import functools

import jax
import jax.numpy as jnp
from jax.experimental import pallas as pl
from jax.experimental.pallas import tpu as pltpu

IN_F = 50 * 4 * 4       # 800
HID = 100               # true hidden width
HID_PAD = 128           # lane-padded hidden width
OUT_F = 2
OUT_PAD = 128           # lane-padded logits width
BN_EPS = 1e-5


def _round_up(n, m):
    return (n + m - 1) // m * m


def dann_domain_kernel(x_ref, w1_ref, b1_ref, gamma_ref, beta_ref,
                       w2_ref, b2_ref, o_ref,
                       h_ref, sum_ref, ssq_ref,
                       *, batch, tile_m, need_mask):
    i = pl.program_id(0)

    @pl.when(i == 0)
    def _init():
        sum_ref[...] = jnp.zeros_like(sum_ref)
        ssq_ref[...] = jnp.zeros_like(ssq_ref)

    # ---- phase 1: per-tile Linear(800 -> 128) on the MXU + batch-stat accumulation
    h = jnp.dot(x_ref[...], w1_ref[...],
                preferred_element_type=jnp.float32) + b1_ref[...]

    if need_mask:
        # Rows >= batch are zero-padding in x, but the bias add makes them non-zero;
        # mask them so they do not contaminate the batch statistics.
        row = i * tile_m + jax.lax.broadcasted_iota(jnp.int32, (tile_m, 1), 0)
        h = jnp.where(row < batch, h, 0.0)

    start = pl.multiple_of(i * tile_m, tile_m)
    h_ref[pl.ds(start, tile_m), :] = h
    sum_ref[...] += jnp.sum(h, axis=0, keepdims=True)
    ssq_ref[...] += jnp.sum(h * h, axis=0, keepdims=True)

    # ---- phase 2: last tile -> BatchNorm (global training stats) + ReLU + Linear
    @pl.when(i == pl.num_programs(0) - 1)
    def _finalize():
        inv_b = jnp.float32(1.0 / batch)
        mean = sum_ref[...] * inv_b
        var = ssq_ref[...] * inv_b - mean * mean          # biased variance
        scale = jax.lax.rsqrt(var + BN_EPS) * gamma_ref[...]
        shift = beta_ref[...] - mean * scale
        h_all = jnp.maximum(h_ref[...] * scale + shift, 0.0)
        o_ref[...] = (jnp.dot(h_all, w2_ref[...],
                              preferred_element_type=jnp.float32)
                      + b2_ref[...]).astype(o_ref.dtype)


def dann_domain_forward(x, w1, b1, gamma, beta, w2, b2, *,
                        use_bf16=True, tile_m=512):
    """x: (B, 800) float32 -> (B, 2) float32."""
    B = x.shape[0]
    tm = _round_up(min(tile_m, _round_up(B, 16)), 16)
    b_pad = _round_up(B, tm)
    num_tiles = b_pad // tm

    # ---- wrapper-side padding to hardware-friendly, lane-dense shapes ----
    x_p = x if b_pad == B else jnp.pad(x, ((0, b_pad - B), (0, 0)))
    w1_p = jnp.pad(w1, ((0, 0), (0, HID_PAD - HID)))        # zero cols -> h pad = 0
    b1_p = jnp.pad(b1, ((0, 0), (0, HID_PAD - HID)))
    g_p = jnp.pad(gamma, ((0, 0), (0, HID_PAD - HID)))      # padded gamma = 0 (inert)
    be_p = jnp.pad(beta, ((0, 0), (0, HID_PAD - HID)))
    w2_p = jnp.pad(w2, ((0, HID_PAD - HID), (0, OUT_PAD - OUT_F)))  # zero rows/cols
    b2_p = jnp.pad(b2, ((0, 0), (0, OUT_PAD - OUT_F)))

    if use_bf16:
        # bf16 MXU inputs with f32 accumulation; also halves the dominant x DMA.
        x_p = x_p.astype(jnp.bfloat16)
        w1_p = w1_p.astype(jnp.bfloat16)

    kernel = functools.partial(dann_domain_kernel, batch=B, tile_m=tm,
                               need_mask=(b_pad != B))

    flops = 2 * b_pad * IN_F * HID_PAD + 2 * b_pad * HID_PAD * OUT_PAD
    bytes_accessed = int(
        x_p.size * x_p.dtype.itemsize
        + w1_p.size * w1_p.dtype.itemsize
        + (b1_p.size + g_p.size + be_p.size + w2_p.size + b2_p.size) * 4
        + b_pad * OUT_PAD * 4)

    out = pl.pallas_call(
        kernel,
        out_shape=jax.ShapeDtypeStruct((b_pad, OUT_PAD), jnp.float32),
        grid=(num_tiles,),
        in_specs=[
            pl.BlockSpec((tm, IN_F), lambda i: (i, 0)),        # x: tiled over batch
            pl.BlockSpec((IN_F, HID_PAD), lambda i: (0, 0)),   # W1: resident
            pl.BlockSpec((1, HID_PAD), lambda i: (0, 0)),      # b1
            pl.BlockSpec((1, HID_PAD), lambda i: (0, 0)),      # gamma
            pl.BlockSpec((1, HID_PAD), lambda i: (0, 0)),      # beta
            pl.BlockSpec((HID_PAD, OUT_PAD), lambda i: (0, 0)),  # W2
            pl.BlockSpec((1, OUT_PAD), lambda i: (0, 0)),      # b2
        ],
        # Output block index is constant across the grid -> resident accumulator,
        # written once on the final grid step (lane-dense 128-wide store).
        out_specs=pl.BlockSpec((b_pad, OUT_PAD), lambda i: (0, 0)),
        scratch_shapes=[
            pltpu.VMEM((b_pad, HID_PAD), jnp.float32),   # resident h
            pltpu.VMEM((1, HID_PAD), jnp.float32),       # column sums
            pltpu.VMEM((1, HID_PAD), jnp.float32),       # column sums of squares
        ],
        compiler_params=pltpu.CompilerParams(
            dimension_semantics=("arbitrary",),          # stats accumulation axis
            vmem_limit_bytes=64 * 1024 * 1024),
        cost_estimate=pl.CostEstimate(flops=flops, transcendentals=0,
                                      bytes_accessed=bytes_accessed),
    )(x_p, w1_p, b1_p, g_p, be_p, w2_p, b2_p)

    return out[:B, :OUT_F]


def init_params(key):
    """Deterministic init mimicking PyTorch nn.Linear default (U(-1/sqrt(in), 1/sqrt(in)))
    and BatchNorm1d default (gamma=1, beta=0). Weights stored as (in, out), unpadded."""
    k1, k2, k3, k4 = jax.random.split(key, 4)
    bound1 = 1.0 / jnp.sqrt(jnp.float32(IN_F))
    bound2 = 1.0 / jnp.sqrt(jnp.float32(HID))
    w1 = jax.random.uniform(k1, (IN_F, HID), jnp.float32, -bound1, bound1)
    b1 = jax.random.uniform(k2, (1, HID), jnp.float32, -bound1, bound1)
    gamma = jnp.ones((1, HID), jnp.float32)
    beta = jnp.zeros((1, HID), jnp.float32)
    w2 = jax.random.uniform(k3, (HID, OUT_F), jnp.float32, -bound2, bound2)
    b2 = jax.random.uniform(k4, (1, OUT_F), jnp.float32, -bound2, bound2)
    return w1, b1, gamma, beta, w2, b2


def reference_forward(x, w1, b1, gamma, beta, w2, b2):
    """Pure-JAX reference (PyTorch BatchNorm1d training-mode forward)."""
    h = x @ w1 + b1
    mean = jnp.mean(h, axis=0, keepdims=True)
    var = jnp.mean((h - mean) ** 2, axis=0, keepdims=True)
    h = (h - mean) / jnp.sqrt(var + BN_EPS) * gamma + beta
    h = jnp.maximum(h, 0.0)
    return h @ w2 + b2
    # TODO(synk): PyTorch BatchNorm1d also updates running_mean/running_var as a side
    # effect in training mode; only the forward output is reproduced here.


if __name__ == "__main__":
    key = jax.random.PRNGKey(0)
    k_param, k_x1, k_x2 = jax.random.split(key, 3)

    params = init_params(k_param)

    # Case 1: small batch, exact f32 path (single grid tile).
    B1 = 8
    x1 = jax.random.normal(k_x1, (B1, IN_F), jnp.float32)   # flattened (B, 50, 4, 4)
    out1 = jax.block_until_ready(dann_domain_forward(x1, *params, use_bf16=False))
    ref1 = reference_forward(x1, *params)
    assert out1.shape == (B1, OUT_F), out1.shape
    assert jnp.allclose(out1, ref1, atol=1e-4, rtol=1e-4), \
        f"max abs err {jnp.max(jnp.abs(out1 - ref1))}"

    # Case 2: multi-tile grid with a ragged final tile (exercises masked
    # batch-stat accumulation across tiles), f32 tight check.
    B2 = 40
    x2 = jax.random.normal(k_x2, (B2, IN_F), jnp.float32)
    ref2 = reference_forward(x2, *params)
    out2f = jax.block_until_ready(
        dann_domain_forward(x2, *params, use_bf16=False, tile_m=16))
    assert out2f.shape == (B2, OUT_F), out2f.shape
    assert jnp.allclose(out2f, ref2, atol=1e-4, rtol=1e-4), \
        f"max abs err {jnp.max(jnp.abs(out2f - ref2))}"

    # Case 2 again with the bf16 MXU fast path (looser tolerance for the cast).
    out2b = jax.block_until_ready(
        dann_domain_forward(x2, *params, use_bf16=True, tile_m=16))
    assert jnp.allclose(out2b, ref2, atol=5e-2, rtol=5e-2), \
        f"max abs err {jnp.max(jnp.abs(out2b - ref2))}"

    print("KERNEL_OK")
</pallas_src>

<mosaic_0001>
module attributes {stable_mosaic.version = 11 : i64} {
  func.func @dann_domain_kernel(%arg0: i32, %arg1: memref<16x800xf32, #tpu.memory_space<vmem>>, %arg2: memref<800x128xf32, #tpu.memory_space<vmem>>, %arg3: memref<1x128xf32, #tpu.memory_space<vmem>>, %arg4: memref<1x128xf32, #tpu.memory_space<vmem>>, %arg5: memref<1x128xf32, #tpu.memory_space<vmem>>, %arg6: memref<128x128xf32, #tpu.memory_space<vmem>>, %arg7: memref<1x128xf32, #tpu.memory_space<vmem>>, %arg8: memref<16x128xf32, #tpu.memory_space<vmem>>, %arg9: memref<16x128xf32, #tpu.memory_space<vmem>>, %arg10: memref<1x128xf32, #tpu.memory_space<vmem>>, %arg11: memref<1x128xf32, #tpu.memory_space<vmem>>) attributes {dimension_semantics = [#tpu.dimension_semantics<arbitrary>], iteration_bounds = array<i64: 1>, scalar_prefetch = 0 : i64, scratch_operands = 3 : i64, tpu.core_type = #tpu.core_type<tc>, window_params = [{transform_indices = @transform_0, window_bounds = array<i64: 16, 800>}, {pipeline_mode = #tpu.pipeline_mode<synchronous>, transform_indices = @transform_1, window_bounds = array<i64: 800, 128>}, {pipeline_mode = #tpu.pipeline_mode<synchronous>, transform_indices = @transform_2, window_bounds = array<i64: 1, 128>}, {pipeline_mode = #tpu.pipeline_mode<synchronous>, transform_indices = @transform_3, window_bounds = array<i64: 1, 128>}, {pipeline_mode = #tpu.pipeline_mode<synchronous>, transform_indices = @transform_4, window_bounds = array<i64: 1, 128>}, {pipeline_mode = #tpu.pipeline_mode<synchronous>, transform_indices = @transform_5, window_bounds = array<i64: 128, 128>}, {pipeline_mode = #tpu.pipeline_mode<synchronous>, transform_indices = @transform_6, window_bounds = array<i64: 1, 128>}, {pipeline_mode = #tpu.pipeline_mode<synchronous>, transform_indices = @transform_7, window_bounds = array<i64: 16, 128>}]} {
    %c0_i32 = arith.constant 0 : i32
    %0 = arith.cmpi eq, %arg0, %c0_i32 : i32
    %1 = arith.extui %0 : i1 to i32
    %c0_i32_0 = arith.constant 0 : i32
    %2 = arith.cmpi ne, %1, %c0_i32_0 : i32
    scf.if %2 {
      %cst_21 = arith.constant 0.000000e+00 : f32
      %37 = vector.broadcast %cst_21 : f32 to vector<1x128xf32>
      %c0_22 = arith.constant 0 : index
      %c0_23 = arith.constant 0 : index
      %38 = vector.load %arg10[%c0_22, %c0_23] : memref<1x128xf32, #tpu.memory_space<vmem>>, vector<1x128xf32>
      tpu.vector_store %arg10[%c0_22, %c0_23], %37 {strides = array<i32>} : memref<1x128xf32, #tpu.memory_space<vmem>>, vector<1x128xf32>,
      %cst_24 = arith.constant 0.000000e+00 : f32
      %39 = vector.broadcast %cst_24 : f32 to vector<1x128xf32>
      %c0_25 = arith.constant 0 : index
      %c0_26 = arith.constant 0 : index
      %40 = vector.load %arg11[%c0_25, %c0_26] : memref<1x128xf32, #tpu.memory_space<vmem>>, vector<1x128xf32>
      tpu.vector_store %arg11[%c0_25, %c0_26], %39 {strides = array<i32>} : memref<1x128xf32, #tpu.memory_space<vmem>>, vector<1x128xf32>,
    } else {
    }
    %c0 = arith.constant 0 : index
    %c0_1 = arith.constant 0 : index
    %3 = vector.load %arg1[%c0, %c0_1] : memref<16x800xf32, #tpu.memory_space<vmem>>, vector<16x800xf32>
    %c0_2 = arith.constant 0 : index
    %c0_3 = arith.constant 0 : index
    %4 = vector.load %arg2[%c0_2, %c0_3] : memref<800x128xf32, #tpu.memory_space<vmem>>, vector<800x128xf32>
    %cst = arith.constant dense<0.000000e+00> : vector<16x128xf32>
    %5 = tpu.matmul %3, %4, %cst {dimension_numbers = #tpu.dot_dimension_numbers<[1], [0], [0], [1], [0, 0, 1, 1], [], []>} : vector<16x800xf32>, vector<800x128xf32>, vector<16x128xf32> -> vector<16x128xf32>
    %c0_4 = arith.constant 0 : index
    %c0_5 = arith.constant 0 : index
    %6 = vector.load %arg3[%c0_4, %c0_5] : memref<1x128xf32, #tpu.memory_space<vmem>>, vector<1x128xf32>
    %7 = vector.broadcast %6 : vector<1x128xf32> to vector<16x128xf32>
    %8 = arith.addf %5, %7 : vector<16x128xf32>
    %c16_i32 = arith.constant 16 : i32
    %9 = arith.muli %arg0, %c16_i32 : i32
    %10 = tpu.iota {dimensions = array<i32: 0>} : vector<16x1xi32>
    %11 = vector.broadcast %9 : i32 to vector<16x1xi32>
    %12 = arith.addi %11, %10 : vector<16x1xi32>
    %c8_i32 = arith.constant 8 : i32
    %13 = vector.broadcast %c8_i32 : i32 to vector<16x1xi32>
    %14 = arith.cmpi slt, %12, %13 : vector<16x1xi32>
    %cst_6 = arith.constant 0.000000e+00 : f32
    %15 = vector.shape_cast %14 : vector<16x1xi1> to vector<16x1xi1>
    %16 = vector.broadcast %15 : vector<16x1xi1> to vector<16x128xi1>
    %17 = vector.broadcast %cst_6 : f32 to vector<16x128xf32>
    %18 = arith.select %16, %8, %17 : vector<16x128xi1>, vector<16x128xf32>
    %c16_i32_7 = arith.constant 16 : i32
    %19 = arith.muli %arg0, %c16_i32_7 : i32
    %20 = tpu.assume_multiple %19, 16 : i32
    %21 = arith.index_cast %20 : i32 to index
    %c0_8 = arith.constant 0 : index
    %22 = vector.load %arg9[%21, %c0_8] : memref<16x128xf32, #tpu.memory_space<vmem>>, vector<16x128xf32>
    tpu.vector_store %arg9[%21, %c0_8], %18 {strides = array<i32>} : memref<16x128xf32, #tpu.memory_space<vmem>>, vector<16x128xf32>,
    %c0_9 = arith.constant 0 : index
    %c0_10 = arith.constant 0 : index
    %23 = vector.load %arg10[%c0_9, %c0_10] : memref<1x128xf32, #tpu.memory_space<vmem>>, vector<1x128xf32>
    %cst_11 = arith.constant dense<0.000000e+00> : vector<128xf32>
    %24 = vector.multi_reduction <add>, %18, %cst_11 [0] : vector<16x128xf32> to vector<128xf32>
    %25 = vector.shape_cast %24 : vector<128xf32> to vector<1x128xf32>
    %26 = arith.addf %23, %25 : vector<1x128xf32>
    %c0_12 = arith.constant 0 : index
    %c0_13 = arith.constant 0 : index
    %27 = vector.load %arg10[%c0_12, %c0_13] : memref<1x128xf32, #tpu.memory_space<vmem>>, vector<1x128xf32>
    tpu.vector_store %arg10[%c0_12, %c0_13], %26 {strides = array<i32>} : memref<1x128xf32, #tpu.memory_space<vmem>>, vector<1x128xf32>,
    %c0_14 = arith.constant 0 : index
    %c0_15 = arith.constant 0 : index
    %28 = vector.load %arg11[%c0_14, %c0_15] : memref<1x128xf32, #tpu.memory_space<vmem>>, vector<1x128xf32>
    %29 = arith.mulf %18, %18 : vector<16x128xf32>
    %cst_16 = arith.constant dense<0.000000e+00> : vector<128xf32>
    %30 = vector.multi_reduction <add>, %29, %cst_16 [0] : vector<16x128xf32> to vector<128xf32>
    %31 = vector.shape_cast %30 : vector<128xf32> to vector<1x128xf32>
    %32 = arith.addf %28, %31 : vector<1x128xf32>
    %c0_17 = arith.constant 0 : index
    %c0_18 = arith.constant 0 : index
    %33 = vector.load %arg11[%c0_17, %c0_18] : memref<1x128xf32, #tpu.memory_space<vmem>>, vector<1x128xf32>
    tpu.vector_store %arg11[%c0_17, %c0_18], %32 {strides = array<i32>} : memref<1x128xf32, #tpu.memory_space<vmem>>, vector<1x128xf32>,
    %c0_i32_19 = arith.constant 0 : i32
    %34 = arith.cmpi eq, %arg0, %c0_i32_19 : i32
    %35 = arith.extui %34 : i1 to i32
    %c0_i32_20 = arith.constant 0 : i32
    %36 = arith.cmpi ne, %35, %c0_i32_20 : i32
    scf.if %36 {
      %c0_21 = arith.constant 0 : index
      %c0_22 = arith.constant 0 : index
      %37 = vector.load %arg10[%c0_21, %c0_22] : memref<1x128xf32, #tpu.memory_space<vmem>>, vector<1x128xf32>
      %cst_23 = arith.constant 1.250000e-01 : f32
      %38 = vector.broadcast %cst_23 : f32 to vector<1x128xf32>
      %39 = arith.mulf %37, %38 : vector<1x128xf32>
      %c0_24 = arith.constant 0 : index
      %c0_25 = arith.constant 0 : index
      %40 = vector.load %arg11[%c0_24, %c0_25] : memref<1x128xf32, #tpu.memory_space<vmem>>, vector<1x128xf32>
      %cst_26 = arith.constant 1.250000e-01 : f32
      %41 = vector.broadcast %cst_26 : f32 to vector<1x128xf32>
      %42 = arith.mulf %40, %41 : vector<1x128xf32>
      %43 = arith.mulf %39, %39 : vector<1x128xf32>
      %44 = arith.subf %42, %43 : vector<1x128xf32>
      %cst_27 = arith.constant 9.99999974E-6 : f32
      %45 = vector.broadcast %cst_27 : f32 to vector<1x128xf32>
      %46 = arith.addf %44, %45 : vector<1x128xf32>
      %47 = math.rsqrt %46 : vector<1x128xf32>
      %c0_28 = arith.constant 0 : index
      %c0_29 = arith.constant 0 : index
      %48 = vector.load %arg4[%c0_28, %c0_29] : memref<1x128xf32, #tpu.memory_space<vmem>>, vector<1x128xf32>
      %49 = arith.mulf %47, %48 : vector<1x128xf32>
      %c0_30 = arith.constant 0 : index
      %c0_31 = arith.constant 0 : index
      %50 = vector.load %arg5[%c0_30, %c0_31] : memref<1x128xf32, #tpu.memory_space<vmem>>, vector<1x128xf32>
      %51 = arith.mulf %39, %49 : vector<1x128xf32>
      %52 = arith.subf %50, %51 : vector<1x128xf32>
      %c0_32 = arith.constant 0 : index
      %c0_33 = arith.constant 0 : index
      %53 = vector.load %arg9[%c0_32, %c0_33] : memref<16x128xf32, #tpu.memory_space<vmem>>, vector<16x128xf32>
      %54 = vector.broadcast %49 : vector<1x128xf32> to vector<16x128xf32>
      %55 = arith.mulf %53, %54 : vector<16x128xf32>
      %56 = vector.broadcast %52 : vector<1x128xf32> to vector<16x128xf32>
      %57 = arith.addf %55, %56 : vector<16x128xf32>
      %cst_34 = arith.constant 0.000000e+00 : f32
      %58 = vector.broadcast %cst_34 : f32 to vector<16x128xf32>
      %59 = arith.maximumf %57, %58 : vector<16x128xf32>
      %c0_35 = arith.constant 0 : index
      %c0_36 = arith.constant 0 : index
      %60 = vector.load %arg6[%c0_35, %c0_36] : memref<128x128xf32, #tpu.memory_space<vmem>>, vector<128x128xf32>
      %cst_37 = arith.constant dense<0.000000e+00> : vector<16x128xf32>
      %61 = tpu.matmul %59, %60, %cst_37 {dimension_numbers = #tpu.dot_dimension_numbers<[1], [0], [0], [1], [0, 0, 1, 1], [], []>} : vector<16x128xf32>, vector<128x128xf32>, vector<16x128xf32> -> vector<16x128xf32>
      %c0_38 = arith.constant 0 : index
      %c0_39 = arith.constant 0 : index
      %62 = vector.load %arg7[%c0_38, %c0_39] : memref<1x128xf32, #tpu.memory_space<vmem>>, vector<1x128xf32>
      %63 = vector.broadcast %62 : vector<1x128xf32> to vector<16x128xf32>
      %64 = arith.addf %61, %63 : vector<16x128xf32>
      %c0_40 = arith.constant 0 : index
      %c0_41 = arith.constant 0 : index
      %65 = vector.load %arg8[%c0_40, %c0_41] : memref<16x128xf32, #tpu.memory_space<vmem>>, vector<16x128xf32>
      tpu.vector_store %arg8[%c0_40, %c0_41], %64 {strides = array<i32>} : memref<16x128xf32, #tpu.memory_space<vmem>>, vector<16x128xf32>,
    } else {
    }
    return
  }
  func.func @transform_0(%arg0: i32) -> (i32, i32) {
    %c0_i32 = arith.constant 0 : i32
    %c0_i32_0 = arith.constant 0 : i32
    return %arg0, %c0_i32 : i32, i32
  }
  func.func @transform_1(%arg0: i32) -> (i32, i32) {
    %c0_i32 = arith.constant 0 : i32
    %c0_i32_0 = arith.constant 0 : i32
    %c0_i32_1 = arith.constant 0 : i32
    return %c0_i32, %c0_i32_0 : i32, i32
  }
  func.func @transform_2(%arg0: i32) -> (i32, i32) {
    %c0_i32 = arith.constant 0 : i32
    %c0_i32_0 = arith.constant 0 : i32
    %c0_i32_1 = arith.constant 0 : i32
    return %c0_i32, %c0_i32_0 : i32, i32
  }
  func.func @transform_3(%arg0: i32) -> (i32, i32) {
    %c0_i32 = arith.constant 0 : i32
    %c0_i32_0 = arith.constant 0 : i32
    %c0_i32_1 = arith.constant 0 : i32
    return %c0_i32, %c0_i32_0 : i32, i32
  }
  func.func @transform_4(%arg0: i32) -> (i32, i32) {
    %c0_i32 = arith.constant 0 : i32
    %c0_i32_0 = arith.constant 0 : i32
    %c0_i32_1 = arith.constant 0 : i32
    return %c0_i32, %c0_i32_0 : i32, i32
  }
  func.func @transform_5(%arg0: i32) -> (i32, i32) {
    %c0_i32 = arith.constant 0 : i32
    %c0_i32_0 = arith.constant 0 : i32
    %c0_i32_1 = arith.constant 0 : i32
    return %c0_i32, %c0_i32_0 : i32, i32
  }
  func.func @transform_6(%arg0: i32) -> (i32, i32) {
    %c0_i32 = arith.constant 0 : i32
    %c0_i32_0 = arith.constant 0 : i32
    %c0_i32_1 = arith.constant 0 : i32
    return %c0_i32, %c0_i32_0 : i32, i32
  }
  func.func @transform_7(%arg0: i32) -> (i32, i32) {
    %c0_i32 = arith.constant 0 : i32
    %c0_i32_0 = arith.constant 0 : i32
    %c0_i32_1 = arith.constant 0 : i32
    return %c0_i32, %c0_i32_0 : i32, i32
  }
}

</mosaic_0001>

<llo_original>
// kernel: tpu_custom_call.1
$region0: #{tpu_custom_call.1}
  #allocation0 [shape = 'u32[]', space=smem, size = 0x4, offset = 0x4, fixed_abs, tag = 'smem constant byte address 0x4 - core index']
  #allocation1 [shape = 'u32[144,128]{1,0:T(1,128)}', space=vmem, size = 0x12000, scoped, tag = 'internal scratch']
  #allocation2 [shape = 'f32[16,128]{1,0:T(8,128)}', space=vmem, size = 0x2000, scoped, tag = 'scratch operand']
  #allocation3 [shape = 'f32[1,128]{1,0:T(1,128)}', space=vmem, size = 0x200, scoped, tag = 'scratch operand']
  #allocation4 [shape = 'f32[1,128]{1,0:T(1,128)}', space=vmem, size = 0x200, scoped, tag = 'scratch operand']
  %s0 = inlined_call_operand.hbm [shape: f32[16,800], index: 0, kind: input, shape index: {}]
  %s1 = inlined_call_operand.hbm [shape: f32[800,128], index: 1, kind: input, shape index: {}]
  %s2 = inlined_call_operand.hbm [shape: f32[1,128], index: 2, kind: input, shape index: {}]
  %s3 = inlined_call_operand.hbm [shape: f32[1,128], index: 3, kind: input, shape index: {}]
  %s4 = inlined_call_operand.hbm [shape: f32[1,128], index: 4, kind: input, shape index: {}]
  %s5 = inlined_call_operand.hbm [shape: f32[128,128], index: 5, kind: input, shape index: {}]
  %s6 = inlined_call_operand.hbm [shape: f32[1,128], index: 6, kind: input, shape index: {}]
  %s7 = inlined_call_operand.hbm [shape: f32[16,128], index: 7, kind: output, shape index: {}]
  %s8 = sld [smem:[#allocation0]]
  $region74: #{tpu_custom_call.1} parent=0
    _
  %s10 = ssub.s32 1, %s8
  %s11 = scalar_select 0, %s10, %s8
  $region1: #{tpu_custom_call.1} parent=0
    #allocation5 [shape = 'u8[57344]{0}', space=vmem, size = 0xe000, scoped, tag = 'input window, operand 0, single buffered']
    #allocation6 [shape = 's32[1]{0}', space=sflag, size = 0x4, scoped, tag = 'scoped memory for tpu_custom_call.1']
    #allocation7 [shape = 's32[1]{0}', space=sflag, size = 0x4, scoped, tag = 'scoped memory for tpu_custom_call.1']
    #allocation8 [shape = 'u8[409600]{0}', space=vmem, size = 0x64000, scoped, tag = 'input window, operand 1, single buffered']
    #allocation9 [shape = 's32[1]{0}', space=sflag, size = 0x4, scoped, tag = 'scoped memory for tpu_custom_call.1']
    #allocation10 [shape = 'u8[512]{0}', space=vmem, size = 0x400, scoped, tag = 'input window, operand 2, single buffered']
    #allocation11 [shape = 'u8[512]{0}', space=vmem, size = 0x400, scoped, tag = 'input window, operand 3, single buffered']
    #allocation12 [shape = 's32[1]{0}', space=sflag, size = 0x4, scoped, tag = 'scoped memory for tpu_custom_call.1']
    #allocation13 [shape = 'u8[512]{0}', space=vmem, size = 0x400, scoped, tag = 'input window, operand 4, single buffered']
    #allocation14 [shape = 'u8[65536]{0}', space=vmem, size = 0x10000, scoped, tag = 'input window, operand 5, single buffered']
    #allocation15 [shape = 's32[1]{0}', space=sflag, size = 0x4, scoped, tag = 'scoped memory for tpu_custom_call.1']
    #allocation16 [shape = 'u8[512]{0}', space=vmem, size = 0x400, scoped, tag = 'input window, operand 6, single buffered']
    #allocation17 [shape = 'u8[8192]{0}', space=vmem, size = 0x2000, scoped, tag = 'output window, operand 0, single buffered']
    %12 = vsyncpa [#allocation6], 0
    %13 = vsyncpa [#allocation9], 0
    %14 = vsyncpa [#allocation12], 0
    %15 = vsyncpa [#allocation15], 0
    %16 = vsyncpa [#allocation7], 0
    // Predicated region
    $region2: #{tpu_custom_call.1} parent=1 // pred_check
      _
    $region3: #{tpu_custom_call.1} parent=1 // pred_check_branch
      %18 = sbr.rel (0) target = $region5
    $region4: #{tpu_custom_call.1} parent=1 // pred_region
      %s20 = ssub.s32 1792, 1792
      %21 = vsyncadd [#allocation6], %s20
      %s22 = sshll.u32 [#allocation5], 4
      %s23 = int_to_ptr.vmem [resolvable:$true] %s22
      %28 = dma.hbm_to_vmem [thread:$0]  %s0, 1792, %s23, [#allocation6], 896, 896, 56
    $region5: #{tpu_custom_call.1} parent=1 // pred_fallthru
      _
    // Predicated region
    $region6: #{tpu_custom_call.1} parent=1 // pred_check
      _
    $region7: #{tpu_custom_call.1} parent=1 // pred_check_branch
      %30 = sbr.rel (0) target = $region9
    $region8: #{tpu_custom_call.1} parent=1 // pred_region
      %s32 = ssub.s32 12800, 12800
      %33 = vsyncadd [#allocation9], %s32
      %s34 = sshll.u32 [#allocation8], 4
      %s35 = int_to_ptr.vmem [resolvable:$true] %s34
      %40 = dma.hbm_to_vmem [thread:$0]  %s1, 12800, %s35, [#allocation9], 128, 128, 8
    $region9: #{tpu_custom_call.1} parent=1 // pred_fallthru
      _
    // Predicated region
    $region10: #{tpu_custom_call.1} parent=1 // pred_check
      _
    $region11: #{tpu_custom_call.1} parent=1 // pred_check_branch
      %42 = sbr.rel (0) target = $region13
    $region12: #{tpu_custom_call.1} parent=1 // pred_region
      %s44 = ssub.s32 16, 16
      %45 = vsyncadd [#allocation9], %s44
      %s47 = sshll.u32 [#allocation10], 4
      %s48 = int_to_ptr.vmem [resolvable:$true] %s47
      %50 = dma.hbm_to_vmem [thread:$0]  %s2, 16, %s48, [#allocation9]
    $region13: #{tpu_custom_call.1} parent=1 // pred_fallthru
      _
    // Predicated region
    $region14: #{tpu_custom_call.1} parent=1 // pred_check
      _
    $region15: #{tpu_custom_call.1} parent=1 // pred_check_branch
      %52 = sbr.rel (0) target = $region17
    $region16: #{tpu_custom_call.1} parent=1 // pred_region
      %s54 = ssub.s32 16, 16
      %55 = vsyncadd [#allocation12], %s54
      %s57 = sshll.u32 [#allocation11], 4
      %s58 = int_to_ptr.vmem [resolvable:$true] %s57
      %60 = dma.hbm_to_vmem [thread:$0]  %s3, 16, %s58, [#allocation12]
    $region17: #{tpu_custom_call.1} parent=1 // pred_fallthru
      _
    // Predicated region
    $region18: #{tpu_custom_call.1} parent=1 // pred_check
      _
    $region19: #{tpu_custom_call.1} parent=1 // pred_check_branch
      %62 = sbr.rel (0) target = $region21
    $region20: #{tpu_custom_call.1} parent=1 // pred_region
      %s64 = ssub.s32 16, 16
      %65 = vsyncadd [#allocation12], %s64
      %s67 = sshll.u32 [#allocation13], 4
      %s68 = int_to_ptr.vmem [resolvable:$true] %s67
      %70 = dma.hbm_to_vmem [thread:$0]  %s4, 16, %s68, [#allocation12]
    $region21: #{tpu_custom_call.1} parent=1 // pred_fallthru
      _
    // Predicated region
    $region22: #{tpu_custom_call.1} parent=1 // pred_check
      _
    $region23: #{tpu_custom_call.1} parent=1 // pred_check_branch
      %72 = sbr.rel (0) target = $region25
    $region24: #{tpu_custom_call.1} parent=1 // pred_region
      %s74 = ssub.s32 2048, 2048
      %75 = vsyncadd [#allocation15], %s74
      %s76 = sshll.u32 [#allocation14], 4
      %s77 = int_to_ptr.vmem [resolvable:$true] %s76
      %82 = dma.hbm_to_vmem [thread:$0]  %s5, 2048, %s77, [#allocation15], 128, 128, 8
    $region25: #{tpu_custom_call.1} parent=1 // pred_fallthru
      _
    // Predicated region
    $region26: #{tpu_custom_call.1} parent=1 // pred_check
      _
    $region27: #{tpu_custom_call.1} parent=1 // pred_check_branch
      %84 = sbr.rel (0) target = $region29
    $region28: #{tpu_custom_call.1} parent=1 // pred_region
      %s86 = ssub.s32 16, 16
      %87 = vsyncadd [#allocation15], %s86
      %s89 = sshll.u32 [#allocation16], 4
      %s90 = int_to_ptr.vmem [resolvable:$true] %s89
      %92 = dma.hbm_to_vmem [thread:$0]  %s6, 16, %s90, [#allocation15]
    $region29: #{tpu_custom_call.1} parent=1 // pred_fallthru
      _
    // Predicated region
    $region30: #{tpu_custom_call.1} parent=1 // pred_check
      _
    $region31: #{tpu_custom_call.1} parent=1 // pred_check_branch
      %94 = sbr.rel (0) target = $region33
    $region32: #{tpu_custom_call.1} parent=1 // pred_region
      %95 = dma.done [#allocation6], 1792
    $region33: #{tpu_custom_call.1} parent=1 // pred_fallthru
      _
    // Predicated region
    $region34: #{tpu_custom_call.1} parent=1 // pred_check
      _
    $region35: #{tpu_custom_call.1} parent=1 // pred_check_branch
      %97 = sbr.rel (0) target = $region37
    $region36: #{tpu_custom_call.1} parent=1 // pred_region
      %98 = dma.done [#allocation9], 12800
    $region37: #{tpu_custom_call.1} parent=1 // pred_fallthru
      _
    // Predicated region
    $region38: #{tpu_custom_call.1} parent=1 // pred_check
      _
    $region39: #{tpu_custom_call.1} parent=1 // pred_check_branch
      %100 = sbr.rel (0) target = $region41
    $region40: #{tpu_custom_call.1} parent=1 // pred_region
      %101 = dma.done [#allocation9], 16
    $region41: #{tpu_custom_call.1} parent=1 // pred_fallthru
      _
    // Predicated region
    $region42: #{tpu_custom_call.1} parent=1 // pred_check
      _
    $region43: #{tpu_custom_call.1} parent=1 // pred_check_branch
      %103 = sbr.rel (0) target = $region45
    $region44: #{tpu_custom_call.1} parent=1 // pred_region
      %104 = dma.done [#allocation12], 16
    $region45: #{tpu_custom_call.1} parent=1 // pred_fallthru
      _
    // Predicated region
    $region46: #{tpu_custom_call.1} parent=1 // pred_check
      _
    $region47: #{tpu_custom_call.1} parent=1 // pred_check_branch
      %106 = sbr.rel (0) target = $region49
    $region48: #{tpu_custom_call.1} parent=1 // pred_region
      %107 = dma.done [#allocation12], 16
    $region49: #{tpu_custom_call.1} parent=1 // pred_fallthru
      _
    // Predicated region
    $region50: #{tpu_custom_call.1} parent=1 // pred_check
      _
    $region51: #{tpu_custom_call.1} parent=1 // pred_check_branch
      %109 = sbr.rel (0) target = $region53
    $region52: #{tpu_custom_call.1} parent=1 // pred_region
      %110 = dma.done [#allocation15], 2048
    $region53: #{tpu_custom_call.1} parent=1 // pred_fallthru
      _
    // Predicated region
    $region54: #{tpu_custom_call.1} parent=1 // pred_check
      _
    $region55: #{tpu_custom_call.1} parent=1 // pred_check_branch
      %112 = sbr.rel (0) target = $region57
    $region56: #{tpu_custom_call.1} parent=1 // pred_region
      %113 = dma.done [#allocation15], 16
    $region57: #{tpu_custom_call.1} parent=1 // pred_fallthru
      _
    %p114 = scmp.eq.s32.totalorder 0, 0
    // Predicated region
    $region58: #{tpu_custom_call.1} parent=1 // pred_check
      %p115 = pneg %p114
    $region59: #{tpu_custom_call.1} parent=1 // pred_check_branch
      %117 = sbr.rel (%p115) target = $region61
    $region60: #{tpu_custom_call.1} parent=1 // pred_region
      %118 = vst [vmem:[#allocation3] sm:$0x1] 0.0
      %119 = vst [vmem:[#allocation4] sm:$0x1] 0.0
    $region61: #{tpu_custom_call.1} parent=1 // pred_fallthru
      _
    %v120 = vld [vmem:[#allocation5] sm:$0xff]
    %v121 = vld [vmem:[#allocation5 + $0x8] sm:$0xff]
    %v122 = vld [vmem:[#allocation5 + $0x10] sm:$0xff]
    %v123 = vld [vmem:[#allocation5 + $0x18] sm:$0xff]
    %v124 = vld [vmem:[#allocation5 + $0x20] sm:$0xff]
    %v125 = vld [vmem:[#allocation5 + $0x28] sm:$0xff]
    %v126 = vld [vmem:[#allocation5 + $0x30] sm:$0xff]
    %v127 = vld [vmem:[#allocation5 + $0x38] sm:$0xff]
    %v128 = vld [vmem:[#allocation5 + $0x40] sm:$0xff]
    %v129 = vld [vmem:[#allocation5 + $0x48] sm:$0xff]
    %v130 = vld [vmem:[#allocation5 + $0x50] sm:$0xff]
    %v131 = vld [vmem:[#allocation5 + $0x58] sm:$0xff]
    %v132 = vld [vmem:[#allocation5 + $0x60] sm:$0xff]
    %v133 = vld [vmem:[#allocation5 + $0x68] sm:$0xff]
    %v134 = vld [vmem:[#allocation8] sm:$0xff]
    %v135 = vld [vmem:[#allocation8 + $0x8] sm:$0xff]
    %v136 = vld [vmem:[#allocation8 + $0x10] sm:$0xff]
    %v137 = vld [vmem:[#allocation8 + $0x18] sm:$0xff]
    %v138 = vld [vmem:[#allocation8 + $0x20] sm:$0xff]
    %v139 = vld [vmem:[#allocation8 + $0x28] sm:$0xff]
    %v140 = vld [vmem:[#allocation8 + $0x30] sm:$0xff]
    %v141 = vld [vmem:[#allocation8 + $0x38] sm:$0xff]
    %v142 = vld [vmem:[#allocation8 + $0x40] sm:$0xff]
    %v143 = vld [vmem:[#allocation8 + $0x48] sm:$0xff]
    %v144 = vld [vmem:[#allocation8 + $0x50] sm:$0xff]
    %v145 = vld [vmem:[#allocation8 + $0x58] sm:$0xff]
    %v146 = vld [vmem:[#allocation8 + $0x60] sm:$0xff]
    %v147 = vld [vmem:[#allocation8 + $0x68] sm:$0xff]
    %v148 = vld [vmem:[#allocation8 + $0x70] sm:$0xff]
    %v149 = vld [vmem:[#allocation8 + $0x78] sm:$0xff]
    %v150 = vld [vmem:[#allocation8 + $0x80] sm:$0xff]
    %v151 = vld [vmem:[#allocation8 + $0x88] sm:$0xff]
    %v152 = vld [vmem:[#allocation8 + $0x90] sm:$0xff]
    %v153 = vld [vmem:[#allocation8 + $0x98] sm:$0xff]
    %v154 = vld [vmem:[#allocation8 + $0xa0] sm:$0xff]
    %v155 = vld [vmem:[#allocation8 + $0xa8] sm:$0xff]
    %v156 = vld [vmem:[#allocation8 + $0xb0] sm:$0xff]
    %v157 = vld [vmem:[#allocation8 + $0xb8] sm:$0xff]
    %v158 = vld [vmem:[#allocation8 + $0xc0] sm:$0xff]
    %v159 = vld [vmem:[#allocation8 + $0xc8] sm:$0xff]
    %v160 = vld [vmem:[#allocation8 + $0xd0] sm:$0xff]
    %v161 = vld [vmem:[#allocation8 + $0xd8] sm:$0xff]
    %v162 = vld [vmem:[#allocation8 + $0xe0] sm:$0xff]
    %v163 = vld [vmem:[#allocation8 + $0xe8] sm:$0xff]
    %v164 = vld [vmem:[#allocation8 + $0xf0] sm:$0xff]
    %v165 = vld [vmem:[#allocation8 + $0xf8] sm:$0xff]
    %v166 = vld [vmem:[#allocation8 + $0x100] sm:$0xff]
    %v167 = vld [vmem:[#allocation8 + $0x108] sm:$0xff]
    %v168 = vld [vmem:[#allocation8 + $0x110] sm:$0xff]
    %v169 = vld [vmem:[#allocation8 + $0x118] sm:$0xff]
    %v170 = vld [vmem:[#allocation8 + $0x120] sm:$0xff]
    %v171 = vld [vmem:[#allocation8 + $0x128] sm:$0xff]
    %v172 = vld [vmem:[#allocation8 + $0x130] sm:$0xff]
    %v173 = vld [vmem:[#allocation8 + $0x138] sm:$0xff]
    %v174 = vld [vmem:[#allocation8 + $0x140] sm:$0xff]
    %v175 = vld [vmem:[#allocation8 + $0x148] sm:$0xff]
    %v176 = vld [vmem:[#allocation8 + $0x150] sm:$0xff]
    %v177 = vld [vmem:[#allocation8 + $0x158] sm:$0xff]
    %v178 = vld [vmem:[#allocation8 + $0x160] sm:$0xff]
    %v179 = vld [vmem:[#allocation8 + $0x168] sm:$0xff]
    %v180 = vld [vmem:[#allocation8 + $0x170] sm:$0xff]
    %v181 = vld [vmem:[#allocation8 + $0x178] sm:$0xff]
    %v182 = vld [vmem:[#allocation8 + $0x180] sm:$0xff]
    %v183 = vld [vmem:[#allocation8 + $0x188] sm:$0xff]
    %v184 = vld [vmem:[#allocation8 + $0x190] sm:$0xff]
    %v185 = vld [vmem:[#allocation8 + $0x198] sm:$0xff]
    %v186 = vld [vmem:[#allocation8 + $0x1a0] sm:$0xff]
    %v187 = vld [vmem:[#allocation8 + $0x1a8] sm:$0xff]
    %v188 = vld [vmem:[#allocation8 + $0x1b0] sm:$0xff]
    %v189 = vld [vmem:[#allocation8 + $0x1b8] sm:$0xff]
    %v190 = vld [vmem:[#allocation8 + $0x1c0] sm:$0xff]
    %v191 = vld [vmem:[#allocation8 + $0x1c8] sm:$0xff]
    %v192 = vld [vmem:[#allocation8 + $0x1d0] sm:$0xff]
    %v193 = vld [vmem:[#allocation8 + $0x1d8] sm:$0xff]
    %v194 = vld [vmem:[#allocation8 + $0x1e0] sm:$0xff]
    %v195 = vld [vmem:[#allocation8 + $0x1e8] sm:$0xff]
    %v196 = vld [vmem:[#allocation8 + $0x1f0] sm:$0xff]
    %v197 = vld [vmem:[#allocation8 + $0x1f8] sm:$0xff]
    %v198 = vld [vmem:[#allocation8 + $0x200] sm:$0xff]
    %v199 = vld [vmem:[#allocation8 + $0x208] sm:$0xff]
    %v200 = vld [vmem:[#allocation8 + $0x210] sm:$0xff]
    %v201 = vld [vmem:[#allocation8 + $0x218] sm:$0xff]
    %v202 = vld [vmem:[#allocation8 + $0x220] sm:$0xff]
    %v203 = vld [vmem:[#allocation8 + $0x228] sm:$0xff]
    %v204 = vld [vmem:[#allocation8 + $0x230] sm:$0xff]
    %v205 = vld [vmem:[#allocation8 + $0x238] sm:$0xff]
    %v206 = vld [vmem:[#allocation8 + $0x240] sm:$0xff]
    %v207 = vld [vmem:[#allocation8 + $0x248] sm:$0xff]
    %v208 = vld [vmem:[#allocation8 + $0x250] sm:$0xff]
    %v209 = vld [vmem:[#allocation8 + $0x258] sm:$0xff]
    %v210 = vld [vmem:[#allocation8 + $0x260] sm:$0xff]
    %v211 = vld [vmem:[#allocation8 + $0x268] sm:$0xff]
    %v212 = vld [vmem:[#allocation8 + $0x270] sm:$0xff]
    %v213 = vld [vmem:[#allocation8 + $0x278] sm:$0xff]
    %v214 = vld [vmem:[#allocation8 + $0x280] sm:$0xff]
    %v215 = vld [vmem:[#allocation8 + $0x288] sm:$0xff]
    %v216 = vld [vmem:[#allocation8 + $0x290] sm:$0xff]
    %v217 = vld [vmem:[#allocation8 + $0x298] sm:$0xff]
    %v218 = vld [vmem:[#allocation8 + $0x2a0] sm:$0xff]
    %v219 = vld [vmem:[#allocation8 + $0x2a8] sm:$0xff]
    %v220 = vld [vmem:[#allocation8 + $0x2b0] sm:$0xff]
    %v221 = vld [vmem:[#allocation8 + $0x2b8] sm:$0xff]
    %v222 = vld [vmem:[#allocation8 + $0x2c0] sm:$0xff]
    %v223 = vld [vmem:[#allocation8 + $0x2c8] sm:$0xff]
    %v224 = vld [vmem:[#allocation8 + $0x2d0] sm:$0xff]
    %v225 = vld [vmem:[#allocation8 + $0x2d8] sm:$0xff]
    %v226 = vld [vmem:[#allocation8 + $0x2e0] sm:$0xff]
    %v227 = vld [vmem:[#allocation8 + $0x2e8] sm:$0xff]
    %v228 = vld [vmem:[#allocation8 + $0x2f0] sm:$0xff]
    %v229 = vld [vmem:[#allocation8 + $0x2f8] sm:$0xff]
    %v230 = vld [vmem:[#allocation8 + $0x300] sm:$0xff]
    %v231 = vld [vmem:[#allocation8 + $0x308] sm:$0xff]
    %v232 = vld [vmem:[#allocation8 + $0x310] sm:$0xff]
    %v233 = vld [vmem:[#allocation8 + $0x318] sm:$0xff]
    %v234 = vld [vmem:[#allocation10] sm:$0x1]
    %v236 = vlaneseq
    %v237 = vshrl.u32 %v236, 7
    %v238 = vsub.s32 0, %v237
    %v239 = vrot.slane %v234, %v238
    %vm241 = vcmask 261120
    %v243 = vsel %vm241, %v126, 0
    %v246 = vsel %vm241, %v133, 0
    %248 = vmatprep.subr.mxu0 0.0
    %249 = vmatpush1.msra.mxu0 %v134
    %250 = vmatprep.subr.mxu0 0.0
    %251 = vmatpush1.msra.mxu0 %v135
    %252 = vmatprep.subr.mxu0 0.0
    %253 = vmatpush1.msra.mxu0 %v136
    %254 = vmatprep.subr.mxu0 0.0
    %255 = vmatpush1.msra.mxu0 %v137
    %256 = vmatprep.subr.mxu0 0.0
    %257 = vmatpush1.msra.mxu0 %v138
    %258 = vmatprep.subr.mxu0 0.0
    %259 = vmatpush1.msra.mxu0 %v139
    %260 = vmatprep.subr.mxu0 0.0
    %261 = vmatpush1.msra.mxu0 %v140
    %262 = vmatprep.subr.mxu0 0.0
    %263 = vmatpush1.msra.mxu0 %v141
    %264 = vmatprep.subr.mxu0 0.0
    %265 = vmatpush1.msra.mxu0 %v142
    %266 = vmatprep.subr.mxu0 0.0
    %267 = vmatpush1.msra.mxu0 %v143
    %268 = vmatprep.subr.mxu0 0.0
    %269 = vmatpush1.msra.mxu0 %v144
    %270 = vmatprep.subr.mxu0 0.0
    %271 = vmatpush1.msra.mxu0 %v145
    %272 = vmatprep.subr.mxu0 0.0
    %273 = vmatpush1.msra.mxu0 %v146
    %274 = vmatprep.subr.mxu0 0.0
    %275 = vmatpush1.msra.mxu0 %v147
    %276 = vmatprep.subr.mxu0 0.0
    %277 = vmatpush1.msra.mxu0 %v148
    %278 = vmatprep.subr.mxu0 0.0
    %279 = vmatpush1.msra.mxu0 %v149
    %280 = vmatprep.subr.mxu0 0.0
    %281 = vmatpush1.msra.mxu0 %v150
    %282 = vmatprep.subr.mxu0 0.0
    %283 = vmatpush1.msra.mxu0 %v151
    %284 = vmatprep.subr.mxu0 0.0
    %285 = vmatpush1.msra.mxu0 %v152
    %286 = vmatprep.subr.mxu0 0.0
    %287 = vmatpush1.msra.mxu0 %v153
    %288 = vmatprep.subr.mxu0 0.0
    %289 = vmatpush1.msra.mxu0 %v154
    %290 = vmatprep.subr.mxu0 0.0
    %291 = vmatpush1.msra.mxu0 %v155
    %292 = vmatprep.subr.mxu0 0.0
    %293 = vmatpush1.msra.mxu0 %v156
    %294 = vmatprep.subr.mxu0 0.0
    %295 = vmatpush1.msra.mxu0 %v157
    %296 = vmatprep.subr.mxu0 0.0
    %297 = vmatpush1.msra.mxu0 %v158
    %298 = vmatprep.subr.mxu0 0.0
    %299 = vmatpush1.msra.mxu0 %v159
    %300 = vmatprep.subr.mxu0 0.0
    %301 = vmatpush1.msra.mxu0 %v160
    %302 = vmatprep.subr.mxu0 0.0
    %303 = vmatpush1.msra.mxu0 %v161
    %304 = vmatprep.subr.mxu0 0.0
    %305 = vmatpush1.msra.mxu0 %v162
    %306 = vmatprep.subr.mxu0 0.0
    %307 = vmatpush1.msra.mxu0 %v163
    %308 = vmatprep.subr.mxu0 0.0
    %309 = vmatpush1.msra.mxu0 %v164
    %310 = vmatprep.subr.mxu0 0.0
    %311 = vmatpush1.msra.mxu0 %v165
    %312 = vmatprep.mubr.f32.mxu0 %v121
    %313 = vmatmul.mubr.f32.gmra.mrb[0].mxu0 %v120
    %v314 = vpop.f32.mrb[0].mxu0
    %v315 = vadd.f32 %v239, %v314
    %v316 = vpop.f32.mrb[0].mxu0
    %317 = vmatprep.mubr.f32.mxu0 %v128
    %318 = vmatmul.mubr.f32.gmra.mrb[0].mxu0 %v127
    %v319 = vpop.f32.mrb[0].mxu0
    %v320 = vadd.f32 %v239, %v319
    %v321 = vpop.f32.mrb[0].mxu0
    %322 = vdwg.mxu0
    %323 = vmatprep.subr.mxu0 0.0
    %324 = vmatpush1.msra.mxu0 %v166
    %325 = vmatprep.subr.mxu0 0.0
    %326 = vmatpush1.msra.mxu0 %v167
    %327 = vmatprep.subr.mxu0 0.0
    %328 = vmatpush1.msra.mxu0 %v168
    %329 = vmatprep.subr.mxu0 0.0
    %330 = vmatpush1.msra.mxu0 %v169
    %331 = vmatprep.subr.mxu0 0.0
    %332 = vmatpush1.msra.mxu0 %v170
    %333 = vmatprep.subr.mxu0 0.0
    %334 = vmatpush1.msra.mxu0 %v171
    %335 = vmatprep.subr.mxu0 0.0
    %336 = vmatpush1.msra.mxu0 %v172
    %337 = vmatprep.subr.mxu0 0.0
    %338 = vmatpush1.msra.mxu0 %v173
    %339 = vmatprep.subr.mxu0 0.0
    %340 = vmatpush1.msra.mxu0 %v174
    %341 = vmatprep.subr.mxu0 0.0
    %342 = vmatpush1.msra.mxu0 %v175
    %343 = vmatprep.subr.mxu0 0.0
    %344 = vmatpush1.msra.mxu0 %v176
    %345 = vmatprep.subr.mxu0 0.0
    %346 = vmatpush1.msra.mxu0 %v177
    %347 = vmatprep.subr.mxu0 0.0
    %348 = vmatpush1.msra.mxu0 %v178
    %349 = vmatprep.subr.mxu0 0.0
    %350 = vmatpush1.msra.mxu0 %v179
    %351 = vmatprep.subr.mxu0 0.0
    %352 = vmatpush1.msra.mxu0 %v180
    %353 = vmatprep.subr.mxu0 0.0
    %354 = vmatpush1.msra.mxu0 %v181
    %355 = vmatprep.subr.mxu0 0.0
    %356 = vmatpush1.msra.mxu0 %v182
    %357 = vmatprep.subr.mxu0 0.0
    %358 = vmatpush1.msra.mxu0 %v183
    %359 = vmatprep.subr.mxu0 0.0
    %360 = vmatpush1.msra.mxu0 %v184
    %361 = vmatprep.subr.mxu0 0.0
    %362 = vmatpush1.msra.mxu0 %v185
    %363 = vmatprep.subr.mxu0 0.0
    %364 = vmatpush1.msra.mxu0 %v186
    %365 = vmatprep.subr.mxu0 0.0
    %366 = vmatpush1.msra.mxu0 %v187
    %367 = vmatprep.subr.mxu0 0.0
    %368 = vmatpush1.msra.mxu0 %v188
    %369 = vmatprep.subr.mxu0 0.0
    %370 = vmatpush1.msra.mxu0 %v189
    %371 = vmatprep.subr.mxu0 0.0
    %372 = vmatpush1.msra.mxu0 %v190
    %373 = vmatprep.subr.mxu0 0.0
    %374 = vmatpush1.msra.mxu0 %v191
    %375 = vmatprep.subr.mxu0 0.0
    %376 = vmatpush1.msra.mxu0 %v192
    %377 = vmatprep.subr.mxu0 0.0
    %378 = vmatpush1.msra.mxu0 %v193
    %379 = vmatprep.subr.mxu0 0.0
    %380 = vmatpush1.msra.mxu0 %v194
    %381 = vmatprep.subr.mxu0 0.0
    %382 = vmatpush1.msra.mxu0 %v195
    %383 = vmatprep.subr.mxu0 0.0
    %384 = vmatpush1.msra.mxu0 %v196
    %385 = vmatprep.subr.mxu0 0.0
    %386 = vmatpush1.msra.mxu0 %v197
    %387 = vmatprep.mubr.f32.mxu0 %v123
    %388 = vmatmul.mubr.f32.gmra.mrb[0].mxu0 %v122
    %v389 = vpop.f32.mrb[0].mxu0
    %v390 = vadd.f32 %v315, %v389
    %v391 = vpop.f32.mrb[0].mxu0
    %392 = vmatprep.mubr.f32.mxu0 %v130
    %393 = vmatmul.mubr.f32.gmra.mrb[0].mxu0 %v129
    %v394 = vpop.f32.mrb[0].mxu0
    %v395 = vadd.f32 %v320, %v394
    %v396 = vpop.f32.mrb[0].mxu0
    %397 = vdwg.mxu0
    %398 = vmatprep.subr.mxu0 0.0
    %399 = vmatpush1.msra.mxu0 %v198
    %400 = vmatprep.subr.mxu0 0.0
    %401 = vmatpush1.msra.mxu0 %v199
    %402 = vmatprep.subr.mxu0 0.0
    %403 = vmatpush1.msra.mxu0 %v200
    %404 = vmatprep.subr.mxu0 0.0
    %405 = vmatpush1.msra.mxu0 %v201
    %406 = vmatprep.subr.mxu0 0.0
    %407 = vmatpush1.msra.mxu0 %v202
    %408 = vmatprep.subr.mxu0 0.0
    %409 = vmatpush1.msra.mxu0 %v203
    %410 = vmatprep.subr.mxu0 0.0
    %411 = vmatpush1.msra.mxu0 %v204
    %412 = vmatprep.subr.mxu0 0.0
    %413 = vmatpush1.msra.mxu0 %v205
    %414 = vmatprep.subr.mxu0 0.0
    %415 = vmatpush1.msra.mxu0 %v206
    %416 = vmatprep.subr.mxu0 0.0
    %417 = vmatpush1.msra.mxu0 %v207
    %418 = vmatprep.subr.mxu0 0.0
    %419 = vmatpush1.msra.mxu0 %v208
    %420 = vmatprep.subr.mxu0 0.0
    %421 = vmatpush1.msra.mxu0 %v209
    %422 = vmatprep.subr.mxu0 0.0
    %423 = vmatpush1.msra.mxu0 %v210
    %424 = vmatprep.subr.mxu0 0.0
    %425 = vmatpush1.msra.mxu0 %v211
    %426 = vmatprep.subr.mxu0 0.0
    %427 = vmatpush1.msra.mxu0 %v212
    %428 = vmatprep.subr.mxu0 0.0
    %429 = vmatpush1.msra.mxu0 %v213
    %430 = vmatprep.subr.mxu0 0.0
    %431 = vmatpush1.msra.mxu0 %v214
    %432 = vmatprep.subr.mxu0 0.0
    %433 = vmatpush1.msra.mxu0 %v215
    %434 = vmatprep.subr.mxu0 0.0
    %435 = vmatpush1.msra.mxu0 %v216
    %436 = vmatprep.subr.mxu0 0.0
    %437 = vmatpush1.msra.mxu0 %v217
    %438 = vmatprep.subr.mxu0 0.0
    %439 = vmatpush1.msra.mxu0 %v218
    %440 = vmatprep.subr.mxu0 0.0
    %441 = vmatpush1.msra.mxu0 %v219
    %442 = vmatprep.subr.mxu0 0.0
    %443 = vmatpush1.msra.mxu0 %v220
    %444 = vmatprep.subr.mxu0 0.0
    %445 = vmatpush1.msra.mxu0 %v221
    %446 = vmatprep.subr.mxu0 0.0
    %447 = vmatpush1.msra.mxu0 %v222
    %448 = vmatprep.subr.mxu0 0.0
    %449 = vmatpush1.msra.mxu0 %v223
    %450 = vmatprep.subr.mxu0 0.0
    %451 = vmatpush1.msra.mxu0 %v224
    %452 = vmatprep.subr.mxu0 0.0
    %453 = vmatpush1.msra.mxu0 %v225
    %454 = vmatprep.subr.mxu0 0.0
    %455 = vmatpush1.msra.mxu0 %v226
    %456 = vmatprep.subr.mxu0 0.0
    %457 = vmatpush1.msra.mxu0 %v227
    %458 = vmatprep.subr.mxu0 0.0
    %459 = vmatpush1.msra.mxu0 %v228
    %460 = vmatprep.subr.mxu0 0.0
    %461 = vmatpush1.msra.mxu0 %v229
    %462 = vmatprep.mubr.f32.mxu0 %v125
    %463 = vmatmul.mubr.f32.gmra.mrb[0].mxu0 %v124
    %v464 = vpop.f32.mrb[0].mxu0
    %v465 = vadd.f32 %v390, %v464
    %v466 = vpop.f32.mrb[0].mxu0
    %467 = vmatprep.mubr.f32.mxu0 %v132
    %468 = vmatmul.mubr.f32.gmra.mrb[0].mxu0 %v131
    %v469 = vpop.f32.mrb[0].mxu0
    %v470 = vadd.f32 %v395, %v469
    %v471 = vpop.f32.mrb[0].mxu0
    %472 = vdwg.mxu0
    %473 = vmatprep.subr.mxu0 0.0
    %474 = vmatpush1.msra.mxu0 %v230
    %475 = vmatprep.subr.mxu0 0.0
    %476 = vmatpush1.msra.mxu0 %v231
    %477 = vmatprep.subr.mxu0 0.0
    %478 = vmatpush1.msra.mxu0 %v232
    %479 = vmatprep.subr.mxu0 0.0
    %480 = vmatpush1.msra.mxu0 %v233
    %481 = vmatprep.subr.mxu0 0.0
    %482 = vmatpush1.msra.mxu0 0.0
    %483 = vmatprep.subr.mxu0 0.0
    %484 = vmatpush1.msra.mxu0 0.0
    %485 = vmatprep.subr.mxu0 0.0
    %486 = vmatpush1.msra.mxu0 0.0
    %487 = vmatprep.subr.mxu0 0.0
    %488 = vmatpush1.msra.mxu0 0.0
    %489 = vmatprep.subr.mxu0 0.0
    %490 = vmatpush1.msra.mxu0 0.0
    %491 = vmatprep.subr.mxu0 0.0
    %492 = vmatpush1.msra.mxu0 0.0
    %493 = vmatprep.subr.mxu0 0.0
    %494 = vmatpush1.msra.mxu0 0.0
    %495 = vmatprep.subr.mxu0 0.0
    %496 = vmatpush1.msra.mxu0 0.0
    %497 = vmatprep.subr.mxu0 0.0
    %498 = vmatpush1.msra.mxu0 0.0
    %499 = vmatprep.subr.mxu0 0.0
    %500 = vmatpush1.msra.mxu0 0.0
    %501 = vmatprep.subr.mxu0 0.0
    %502 = vmatpush1.msra.mxu0 0.0
    %503 = vmatprep.subr.mxu0 0.0
    %504 = vmatpush1.msra.mxu0 0.0
    %505 = vmatprep.subr.mxu0 0.0
    %506 = vmatpush1.msra.mxu0 0.0
    %507 = vmatprep.subr.mxu0 0.0
    %508 = vmatpush1.msra.mxu0 0.0
    %509 = vmatprep.subr.mxu0 0.0
    %510 = vmatpush1.msra.mxu0 0.0
    %511 = vmatprep.subr.mxu0 0.0
    %512 = vmatpush1.msra.mxu0 0.0
    %513 = vmatprep.subr.mxu0 0.0
    %514 = vmatpush1.msra.mxu0 0.0
    %515 = vmatprep.subr.mxu0 0.0
    %516 = vmatpush1.msra.mxu0 0.0
    %517 = vmatprep.subr.mxu0 0.0
    %518 = vmatpush1.msra.mxu0 0.0
    %519 = vmatprep.subr.mxu0 0.0
    %520 = vmatpush1.msra.mxu0 0.0
    %521 = vmatprep.subr.mxu0 0.0
    %522 = vmatpush1.msra.mxu0 0.0
    %523 = vmatprep.subr.mxu0 0.0
    %524 = vmatpush1.msra.mxu0 0.0
    %525 = vmatprep.subr.mxu0 0.0
    %526 = vmatpush1.msra.mxu0 0.0
    %527 = vmatprep.subr.mxu0 0.0
    %528 = vmatpush1.msra.mxu0 0.0
    %529 = vmatprep.subr.mxu0 0.0
    %530 = vmatpush1.msra.mxu0 0.0
    %531 = vmatprep.subr.mxu0 0.0
    %532 = vmatpush1.msra.mxu0 0.0
    %533 = vmatprep.subr.mxu0 0.0
    %534 = vmatpush1.msra.mxu0 0.0
    %535 = vmatprep.subr.mxu0 0.0
    %536 = vmatpush1.msra.mxu0 0.0
    %537 = vmatprep.mubr.f32.mxu0 0.0
    %538 = vmatmul.mubr.f32.gmra.mrb[0].mxu0 %v243
    %v539 = vpop.f32.mrb[0].mxu0
    %v540 = vadd.f32 %v465, %v539
    %v541 = vpop.f32.mrb[0].mxu0
    %542 = vmatprep.mubr.f32.mxu0 0.0
    %543 = vmatmul.mubr.f32.gmra.mrb[0].mxu0 %v246
    %v544 = vpop.f32.mrb[0].mxu0
    %v545 = vadd.f32 %v470, %v544
    %v546 = vpop.f32.mrb[0].mxu0
    %547 = vdwg.mxu0
    %s548 = smul.u32 0, 16
    %v549 = vlaneseq
    %v550 = vshrl.u32 %v549, 7
    %v551 = vadd.s32 %v550, 8
    %v552 = vstv %s548
    %v553 = vadd.s32 %v552, %v550
    %v554 = vadd.s32 %v552, %v551
    %vm555 = vcmp.lt.s32.totalorder %v553, 8
    %vm556 = vcmp.lt.s32.totalorder %v554, 8
    %v557 = vsel %vm555, 1, 0
    %v558 = vsel %vm556, 1, 0
    %vm559 = vcmp.eq.s32.totalorder %v557, 1
    %vm560 = vcmp.eq.s32.totalorder %v558, 1
    %v561 = vsel %vm559, %v540, 0.0
    %v562 = vsel %vm560, %v545, 0.0
    %s563 = scalar_lea.vmem [#allocation2], %s548
    %564 = vst [vmem:[%s563] sm:$0xff] %v561
    %565 = vst [vmem:[%s563 + $0x8] sm:$0xff] %v562
    %v566 = vld [vmem:[#allocation3] sm:$0x1]
    %v567 = vadd.f32 %v561, %v562
    %v568 = vrot.slane %v567, 4
    %v569 = vadd.f32 %v567, %v568
    %v570 = vrot.slane %v569, 2
    %v571 = vadd.f32 %v569, %v570
    %v572 = vrot.slane %v571, 1
    %v573 = vadd.f32 %v571, %v572
    %v574 = vadd.f32 %v566, %v573
    %575 = vst [vmem:[#allocation3] sm:$0x1] %v574
    %v576 = vld [vmem:[#allocation4] sm:$0x1]
    %v577 = vmul.f32 %v561, %v561
    %v578 = vmul.f32 %v562, %v562
    %v579 = vadd.f32 %v577, %v578
    %v580 = vrot.slane %v579, 4
    %v581 = vadd.f32 %v579, %v580
    %v582 = vrot.slane %v581, 2
    %v583 = vadd.f32 %v581, %v582
    %v584 = vrot.slane %v583, 1
    %v585 = vadd.f32 %v583, %v584
    %v586 = vadd.f32 %v576, %v585
    %587 = vst [vmem:[#allocation4] sm:$0x1] %v586
    // Predicated region
    $region62: #{tpu_custom_call.1} parent=1 // pred_check
      %p588 = pneg %p114
    $region63: #{tpu_custom_call.1} parent=1 // pred_check_branch
      %590 = sbr.rel (%p588) target = $region65
    $region64: #{tpu_custom_call.1} parent=1 // pred_region
      %v591 = vld [vmem:[#allocation3] sm:$0x1]
      %v592 = vmul.f32 %v591, 0.125
      %v593 = vld [vmem:[#allocation4] sm:$0x1]
      %v594 = vmul.f32 %v593, 0.125
      %v595 = vmul.f32 %v592, %v592
      %v596 = vsub.f32 %v594, %v595
      %v597 = vadd.f32 %v596, 1e-05
      %v598 = vrsqrt.pop %v597
      %v599 = vld [vmem:[#allocation11] sm:$0x1]
      %v600 = vmul.f32 %v598, %v599
      %v601 = vld [vmem:[#allocation13] sm:$0x1]
      %v602 = vmul.f32 %v592, %v600
      %v603 = vsub.f32 %v601, %v602
      %v604 = vld [vmem:[#allocation2] sm:$0xff]
      %v605 = vld [vmem:[#allocation2 + $0x8] sm:$0xff]
      %v607 = vlaneseq
      %v608 = vshrl.u32 %v607, 7
      %v609 = vsub.s32 0, %v608
      %v610 = vrot.slane %v600, %v609
      %v612 = vmul.f32 %v604, %v610
      %v613 = vmul.f32 %v605, %v610
      %v615 = vlaneseq
      %v616 = vshrl.u32 %v615, 7
      %v617 = vsub.s32 0, %v616
      %v618 = vrot.slane %v603, %v617
      %v620 = vadd.f32 %v612, %v618
      %v621 = vadd.f32 %v613, %v618
      %v622 = vmax.f32 %v620, 0.0
      %v623 = vmax.f32 %v621, 0.0
      %v624 = vld [vmem:[#allocation14] sm:$0xff]
      %v625 = vld [vmem:[#allocation14 + $0x8] sm:$0xff]
      %v626 = vld [vmem:[#allocation14 + $0x10] sm:$0xff]
      %v627 = vld [vmem:[#allocation14 + $0x18] sm:$0xff]
      %v628 = vld [vmem:[#allocation14 + $0x20] sm:$0xff]
      %v629 = vld [vmem:[#allocation14 + $0x28] sm:$0xff]
      %v630 = vld [vmem:[#allocation14 + $0x30] sm:$0xff]
      %v631 = vld [vmem:[#allocation14 + $0x38] sm:$0xff]
      %v632 = vld [vmem:[#allocation14 + $0x40] sm:$0xff]
      %v633 = vld [vmem:[#allocation14 + $0x48] sm:$0xff]
      %v634 = vld [vmem:[#allocation14 + $0x50] sm:$0xff]
      %v635 = vld [vmem:[#allocation14 + $0x58] sm:$0xff]
      %v636 = vld [vmem:[#allocation14 + $0x60] sm:$0xff]
      %v637 = vld [vmem:[#allocation14 + $0x68] sm:$0xff]
      %v638 = vld [vmem:[#allocation14 + $0x70] sm:$0xff]
      %v639 = vld [vmem:[#allocation14 + $0x78] sm:$0xff]
      %v640 = vld [vmem:[#allocation16] sm:$0x1]
      %v642 = vlaneseq
      %v643 = vshrl.u32 %v642, 7
      %v644 = vsub.s32 0, %v643
      %v645 = vrot.slane %v640, %v644
      %647 = vmatprep.subr.mxu0 0.0
      %648 = vmatpush1.msra.mxu0 %v624
      %649 = vmatprep.subr.mxu0 0.0
      %650 = vmatpush1.msra.mxu0 %v625
      %651 = vmatprep.subr.mxu0 0.0
      %652 = vmatpush1.msra.mxu0 %v626
      %653 = vmatprep.subr.mxu0 0.0
      %654 = vmatpush1.msra.mxu0 %v627
      %655 = vmatprep.subr.mxu0 0.0
      %656 = vmatpush1.msra.mxu0 %v628
      %657 = vmatprep.subr.mxu0 0.0
      %658 = vmatpush1.msra.mxu0 %v629
      %659 = vmatprep.subr.mxu0 0.0
      %660 = vmatpush1.msra.mxu0 %v630
      %661 = vmatprep.subr.mxu0 0.0
      %662 = vmatpush1.msra.mxu0 %v631
      %663 = vmatprep.subr.mxu0 0.0
      %664 = vmatpush1.msra.mxu0 %v632
      %665 = vmatprep.subr.mxu0 0.0
      %666 = vmatpush1.msra.mxu0 %v633
      %667 = vmatprep.subr.mxu0 0.0
      %668 = vmatpush1.msra.mxu0 %v634
      %669 = vmatprep.subr.mxu0 0.0
      %670 = vmatpush1.msra.mxu0 %v635
      %671 = vmatprep.subr.mxu0 0.0
      %672 = vmatpush1.msra.mxu0 %v636
      %673 = vmatprep.subr.mxu0 0.0
      %674 = vmatpush1.msra.mxu0 %v637
      %675 = vmatprep.subr.mxu0 0.0
      %676 = vmatpush1.msra.mxu0 %v638
      %677 = vmatprep.subr.mxu0 0.0
      %678 = vmatpush1.msra.mxu0 %v639
      %679 = vmatprep.subr.mxu0 0.0
      %680 = vmatpush1.msra.mxu0 0.0
      %681 = vmatprep.subr.mxu0 0.0
      %682 = vmatpush1.msra.mxu0 0.0
      %683 = vmatprep.subr.mxu0 0.0
      %684 = vmatpush1.msra.mxu0 0.0
      %685 = vmatprep.subr.mxu0 0.0
      %686 = vmatpush1.msra.mxu0 0.0
      %687 = vmatprep.subr.mxu0 0.0
      %688 = vmatpush1.msra.mxu0 0.0
      %689 = vmatprep.subr.mxu0 0.0
      %690 = vmatpush1.msra.mxu0 0.0
      %691 = vmatprep.subr.mxu0 0.0
      %692 = vmatpush1.msra.mxu0 0.0
      %693 = vmatprep.subr.mxu0 0.0
      %694 = vmatpush1.msra.mxu0 0.0
      %695 = vmatprep.subr.mxu0 0.0
      %696 = vmatpush1.msra.mxu0 0.0
      %697 = vmatprep.subr.mxu0 0.0
      %698 = vmatpush1.msra.mxu0 0.0
      %699 = vmatprep.subr.mxu0 0.0
      %700 = vmatpush1.msra.mxu0 0.0
      %701 = vmatprep.subr.mxu0 0.0
      %702 = vmatpush1.msra.mxu0 0.0
      %703 = vmatprep.subr.mxu0 0.0
      %704 = vmatpush1.msra.mxu0 0.0
      %705 = vmatprep.subr.mxu0 0.0
      %706 = vmatpush1.msra.mxu0 0.0
      %707 = vmatprep.subr.mxu0 0.0
      %708 = vmatpush1.msra.mxu0 0.0
      %709 = vmatprep.subr.mxu0 0.0
      %710 = vmatpush1.msra.mxu0 0.0
      %711 = vmatprep.mubr.f32.mxu0 0.0
      %712 = vmatmul.mubr.f32.gmra.mrb[0].mxu0 %v622
      %v713 = vpop.f32.mrb[0].mxu0
      %v714 = vadd.f32 %v645, %v713
      %v715 = vpop.f32.mrb[0].mxu0
      %716 = vmatprep.mubr.f32.mxu0 0.0
      %717 = vmatmul.mubr.f32.gmra.mrb[0].mxu0 %v623
      %v718 = vpop.f32.mrb[0].mxu0
      %v719 = vadd.f32 %v645, %v718
      %v720 = vpop.f32.mrb[0].mxu0
      %721 = vdwg.mxu0
      %722 = vst [vmem:[#allocation17] sm:$0xff] %v714
      %723 = vst [vmem:[#allocation17 + $0x8] sm:$0xff] %v719
    $region65: #{tpu_custom_call.1} parent=1 // pred_fallthru
      _
    // Predicated region
    $region66: #{tpu_custom_call.1} parent=1 // pred_check
      _
    $region67: #{tpu_custom_call.1} parent=1 // pred_check_branch
      %725 = sbr.rel (0) target = $region69
    $region68: #{tpu_custom_call.1} parent=1 // pred_region
      %s727 = ssub.s32 256, 256
      %728 = vsyncadd [#allocation7], %s727
      %s729 = sshll.u32 [#allocation17], 4
      %s730 = int_to_ptr.vmem [resolvable:$true] %s729
      %735 = dma.vmem_to_hbm [thread:$0]  %s730, 256, %s7, [#allocation7], 128, 128, 8
    $region69: #{tpu_custom_call.1} parent=1 // pred_fallthru
      _
    // Predicated region
    $region70: #{tpu_custom_call.1} parent=1 // pred_check
      _
    $region71: #{tpu_custom_call.1} parent=1 // pred_check_branch
      %737 = sbr.rel (0) target = $region73
    $region72: #{tpu_custom_call.1} parent=1 // pred_region
      %738 = dma.done [#allocation7], 256
    $region73: #{tpu_custom_call.1} parent=1 // pred_fallthru
      _
    %739 = vsyncpa [#allocation6], 1
    %740 = vsyncpa [#allocation9], 1
    %741 = vsyncpa [#allocation12], 1
    %742 = vsyncpa [#allocation15], 1
    %743 = vsyncpa [#allocation7], 1

</llo_original>
